<compile_context>
chip_gen: v7x
topology: tpu7x:2x2x1
jax: 0.10.0
libtpu: 0.0.40
codegen_flags: <defaults>
</compile_context>

<pallas_src>
import functools

import jax
import jax.numpy as jnp
from jax.experimental import pallas as pl
from jax.experimental.pallas import tpu as pltpu


def _cnn_kernel(x_ref, w_ref, b_ref, o_ref, *, k, out_len, btile):
    # x_ref: (btile, l_pad_a, Cin) bf16 -- zero-padded along L, 8-aligned length
    # w_ref: (K*Cin, Cout)         bf16 -- im2col weight
    # b_ref: (1, Cout)             f32
    # o_ref: (btile, Cout)         f32
    x = x_ref[...]
    cin = x.shape[-1]
    cout = o_ref.shape[-1]

    # im2col: K shifted slabs concatenated along the lane axis.
    # (Interior slice starts are not 8-aligned for t=1..k-1; at k<=7 the relayout
    #  cost is negligible next to the single deep matmul below.)
    slabs = [x[:, t:t + out_len, :] for t in range(k)]
    xcol = jnp.concatenate(slabs, axis=-1)              # (btile, out_len, K*Cin)
    xcol = xcol.reshape(btile * out_len, k * cin)       # fold batch into M

    # One MXU matmul, f32 accumulation.
    acc = jnp.dot(xcol, w_ref[...], preferred_element_type=jnp.float32)
    acc = acc + b_ref[...]                              # (M, Cout) + (1, Cout)

    acc = acc.reshape(btile, out_len, cout)
    # ReLU is monotone, so relu(max_i z_i) == max_i relu(z_i); apply after the
    # reduction to touch btile*Cout elements instead of M*Cout.
    o_ref[...] = jnp.maximum(jnp.max(acc, axis=1), 0.0)


def cnn_forward(x_ncl, weight, bias, *, kernel_size, target_m=256):
    """x_ncl: (B, 256, L) f32; weight: (Cout, 256, K); bias: (Cout,) -> (B, Cout)."""
    b, cin, seq_len = x_ncl.shape
    cout = weight.shape[0]
    k = kernel_size
    pad = (k - 1) >> 1
    out_len = seq_len + 2 * pad - k + 1
    assert out_len >= 1, "kernel_size too large for sequence length"

    # --- tiling --------------------------------------------------------------
    l_pad = seq_len + 2 * pad
    l_pad_a = -(-l_pad // 8) * 8                      # sublane-align padded length

    # Fold the batch into the matmul M dim: aim for M = btile*out_len ~= 256
    # (fills the 256-wide MXU on v6e/v7x; >=128 already saturates v5e), capped by
    # the real batch and by a per-buffer VMEM budget (v7x has only 64 MiB VMEM).
    btile = max(1, min(b, max(1, target_m // out_len)))
    vmem_cap_bytes = 4 << 20                          # per x block (x2 double-buffer)
    btile = max(1, min(btile, vmem_cap_bytes // (l_pad_a * cin * 2)))
    b_pad = -(-b // btile) * btile
    grid = b_pad // btile
    # NOTE: on v7x (2 TCs) prefer grid >= 2 along the "parallel" axis; with large
    # batches this holds automatically.

    # --- wrapper glue (one fused pass over x under XLA) -----------------------
    # TODO(synk): for large L, fuse the NCL->NLC transpose into the upstream
    # producer and fold the zero-padding into the kernel (pl.ANY + manual DMA)
    # to avoid this extra HBM round-trip.
    x_blc = jnp.transpose(x_ncl, (0, 2, 1)).astype(jnp.bfloat16)   # (B, L, Cin)
    x_blc = jnp.pad(
        x_blc,
        ((0, b_pad - b), (pad, pad + (l_pad_a - l_pad)), (0, 0)))  # (B_pad, l_pad_a, Cin)
    # im2col weight: W2[t*Cin + c, o] = weight[o, c, t]
    w2 = jnp.transpose(weight, (2, 1, 0)).reshape(k * cin, cout).astype(jnp.bfloat16)
    b_2d = bias.reshape(1, cout).astype(jnp.float32)

    kernel = functools.partial(_cnn_kernel, k=k, out_len=out_len, btile=btile)

    cost = pl.CostEstimate(
        flops=2 * b_pad * out_len * k * cin * cout,
        transcendentals=0,
        bytes_accessed=(b_pad * l_pad_a * cin * 2      # bf16 activations
                        + k * cin * cout * 2           # bf16 weight
                        + cout * 4                     # bias
                        + b_pad * cout * 4),           # f32 output
    )

    out = pl.pallas_call(
        kernel,
        out_shape=jax.ShapeDtypeStruct((b_pad, cout), jnp.float32),
        grid_spec=pltpu.PrefetchScalarGridSpec(
            num_scalar_prefetch=0,
            grid=(grid,),
            in_specs=[
                pl.BlockSpec((btile, l_pad_a, cin), lambda i: (i, 0, 0)),
                pl.BlockSpec((k * cin, cout), lambda i: (0, 0)),
                pl.BlockSpec((1, cout), lambda i: (0, 0)),
            ],
            out_specs=pl.BlockSpec((btile, cout), lambda i: (i, 0)),
        ),
        compiler_params=pltpu.CompilerParams(
            dimension_semantics=("parallel",)),
        cost_estimate=cost,
    )(x_blc, w2, b_2d)

    return out[:b]


def _reference(x_ncl, weight, bias, *, kernel_size):
    """Pure-JAX f32 reference matching torch Conv1d + ReLU + max(dim=2)."""
    pad = (kernel_size - 1) >> 1
    y = jax.lax.conv_general_dilated(
        x_ncl, weight, window_strides=(1,), padding=[(pad, pad)],
        dimension_numbers=("NCH", "OIH", "NCH"))
    y = y + bias[None, :, None]
    y = jnp.maximum(y, 0.0)
    return jnp.max(y, axis=2)


if __name__ == "__main__":
    # Small deterministic config: hidden_size=32, kernel_size=3, batch=8, L=16
    # (Cin=256 is fixed by the module).  btile=8 -> M = 8*16 = 128 per MXU matmul.
    B, CIN, L = 8, 256, 16
    HIDDEN, KSIZE = 32, 3

    key = jax.random.PRNGKey(0)
    kx, kw, kb = jax.random.split(key, 3)
    x = jax.random.normal(kx, (B, CIN, L), dtype=jnp.float32)
    weight = jax.random.normal(kw, (HIDDEN, CIN, KSIZE), dtype=jnp.float32) * 0.05
    bias = jax.random.normal(kb, (HIDDEN,), dtype=jnp.float32) * 0.05

    out = jax.block_until_ready(cnn_forward(x, weight, bias, kernel_size=KSIZE))
    ref = _reference(x, weight, bias, kernel_size=KSIZE)

    assert out.shape == (B, HIDDEN)
    # bf16 MXU operands (f32 accumulation) -> relaxed tolerance vs the f32 reference.
    assert jnp.allclose(out, ref, atol=3e-2, rtol=3e-2), (
        float(jnp.max(jnp.abs(out - ref))))

    print("KERNEL_OK")
</pallas_src>

<mosaic_0001>
module attributes {stable_mosaic.version = 11 : i64} {
  func.func @_cnn_kernel(%arg0: i32, %arg1: memref<8x24x256xbf16, #tpu.memory_space<vmem>>, %arg2: memref<768x32xbf16, #tpu.memory_space<vmem>>, %arg3: memref<1x32xf32, #tpu.memory_space<vmem>>, %arg4: memref<8x32xf32, #tpu.memory_space<vmem>>) attributes {dimension_semantics = [#tpu.dimension_semantics<parallel>], iteration_bounds = array<i64: 1>, scalar_prefetch = 0 : i64, scratch_operands = 0 : i64, tpu.core_type = #tpu.core_type<tc>, window_params = [{transform_indices = @transform_0, window_bounds = array<i64: 8, 24, 256>}, {pipeline_mode = #tpu.pipeline_mode<synchronous>, transform_indices = @transform_1, window_bounds = array<i64: 768, 32>}, {pipeline_mode = #tpu.pipeline_mode<synchronous>, transform_indices = @transform_2, window_bounds = array<i64: 1, 32>}, {transform_indices = @transform_3, window_bounds = array<i64: 8, 32>}]} {
    %c0 = arith.constant 0 : index
    %c0_0 = arith.constant 0 : index
    %c0_1 = arith.constant 0 : index
    %0 = vector.load %arg1[%c0, %c0_0, %c0_1] : memref<8x24x256xbf16, #tpu.memory_space<vmem>>, vector<8x24x256xbf16>
    %1 = vector.extract_strided_slice %0 {offsets = [0, 0, 0], sizes = [8, 16, 256], strides = [1, 1, 1]} : vector<8x24x256xbf16> to vector<8x16x256xbf16>
    %2 = vector.extract_strided_slice %0 {offsets = [0, 1, 0], sizes = [8, 16, 256], strides = [1, 1, 1]} : vector<8x24x256xbf16> to vector<8x16x256xbf16>
    %3 = vector.extract_strided_slice %0 {offsets = [0, 2, 0], sizes = [8, 16, 256], strides = [1, 1, 1]} : vector<8x24x256xbf16> to vector<8x16x256xbf16>
    %4 = tpu.concatenate %1, %2, %3 in 2 : vector<8x16x256xbf16>, vector<8x16x256xbf16>, vector<8x16x256xbf16> -> vector<8x16x768xbf16>
    %5 = vector.shape_cast %4 : vector<8x16x768xbf16> to vector<128x768xbf16>
    %c0_2 = arith.constant 0 : index
    %c0_3 = arith.constant 0 : index
    %6 = vector.load %arg2[%c0_2, %c0_3] : memref<768x32xbf16, #tpu.memory_space<vmem>>, vector<768x32xbf16>
    %cst = arith.constant dense<0.000000e+00> : vector<128x32xf32>
    %7 = tpu.matmul %5, %6, %cst {dimension_numbers = #tpu.dot_dimension_numbers<[1], [0], [0], [1], [0, 0, 1, 1], [], []>} : vector<128x768xbf16>, vector<768x32xbf16>, vector<128x32xf32> -> vector<128x32xf32>
    %c0_4 = arith.constant 0 : index
    %c0_5 = arith.constant 0 : index
    %8 = vector.load %arg3[%c0_4, %c0_5] : memref<1x32xf32, #tpu.memory_space<vmem>>, vector<1x32xf32>
    %9 = vector.broadcast %8 : vector<1x32xf32> to vector<128x32xf32>
    %10 = arith.addf %7, %9 : vector<128x32xf32>
    %11 = vector.shape_cast %10 : vector<128x32xf32> to vector<8x16x32xf32>
    %cst_6 = arith.constant dense<0xFF800000> : vector<8x32xf32>
    %12 = vector.multi_reduction <maximumf>, %11, %cst_6 [1] : vector<8x16x32xf32> to vector<8x32xf32>
    %cst_7 = arith.constant 0.000000e+00 : f32
    %13 = vector.broadcast %cst_7 : f32 to vector<8x32xf32>
    %14 = arith.maximumf %12, %13 : vector<8x32xf32>
    %c0_8 = arith.constant 0 : index
    %c0_9 = arith.constant 0 : index
    %15 = vector.load %arg4[%c0_8, %c0_9] : memref<8x32xf32, #tpu.memory_space<vmem>>, vector<8x32xf32>
    tpu.vector_store %arg4[%c0_8, %c0_9], %14 {strides = array<i32>} : memref<8x32xf32, #tpu.memory_space<vmem>>, vector<8x32xf32>,
    return
  }
  func.func @transform_0(%arg0: i32) -> (i32, i32, i32) {
    %c0_i32 = arith.constant 0 : i32
    %c0_i32_0 = arith.constant 0 : i32
    %c0_i32_1 = arith.constant 0 : i32
    return %arg0, %c0_i32, %c0_i32_0 : i32, i32, i32
  }
  func.func @transform_1(%arg0: i32) -> (i32, i32) {
    %c0_i32 = arith.constant 0 : i32
    %c0_i32_0 = arith.constant 0 : i32
    %c0_i32_1 = arith.constant 0 : i32
    return %c0_i32, %c0_i32_0 : i32, i32
  }
  func.func @transform_2(%arg0: i32) -> (i32, i32) {
    %c0_i32 = arith.constant 0 : i32
    %c0_i32_0 = arith.constant 0 : i32
    %c0_i32_1 = arith.constant 0 : i32
    return %c0_i32, %c0_i32_0 : i32, i32
  }
  func.func @transform_3(%arg0: i32) -> (i32, i32) {
    %c0_i32 = arith.constant 0 : i32
    %c0_i32_0 = arith.constant 0 : i32
    return %arg0, %c0_i32 : i32, i32
  }
}

</mosaic_0001>

<llo_original>
// kernel: tpu_custom_call.1
$region0: #{tpu_custom_call.1}
  #allocation0 [shape = 'u32[]', space=smem, size = 0x4, offset = 0x4, fixed_abs, tag = 'smem constant byte address 0x4 - core index']
  #allocation1 [shape = 'u32[144,128]{1,0:T(1,128)}', space=vmem, size = 0x12000, scoped, tag = 'internal scratch']
  %s0 = inlined_call_operand.vmem [shape: bf16[8,24,256], index: 0, kind: input, shape index: {}]
  %s1 = inlined_call_operand.vmem [shape: bf16[768,32], index: 1, kind: input, shape index: {}]
  %s2 = inlined_call_operand.vmem [shape: f32[1,32], index: 2, kind: input, shape index: {}]
  %s3 = inlined_call_operand.hbm [shape: f32[8,32], index: 3, kind: output, shape index: {}]
  %s4 = sld [smem:[#allocation0]]
  $region22: #{tpu_custom_call.1} parent=0
    _
  %s6 = ssub.s32 1, %s4
  %s7 = scalar_select 0, %s6, %s4
  $region1: #{tpu_custom_call.1} parent=0
    #allocation2 [shape = 'u8[4096]{0}', space=vmem, size = 0x1000, scoped, tag = 'output window, operand 0, single buffered']
    #allocation3 [shape = 's32[1]{0}', space=sflag, size = 0x4, scoped, tag = 'scoped memory for tpu_custom_call.1']
    %8 = vsyncpa [#allocation3], 0
    // Predicated region
    $region2: #{tpu_custom_call.1} parent=1 // pred_check
      _
    $region3: #{tpu_custom_call.1} parent=1 // pred_check_branch
      %10 = sbr.rel (0) target = $region5
    $region4: #{tpu_custom_call.1} parent=1 // pred_region
      _
    $region5: #{tpu_custom_call.1} parent=1 // pred_fallthru
      _
    // Predicated region
    $region6: #{tpu_custom_call.1} parent=1 // pred_check
      _
    $region7: #{tpu_custom_call.1} parent=1 // pred_check_branch
      %12 = sbr.rel (0) target = $region9
    $region8: #{tpu_custom_call.1} parent=1 // pred_region
      _
    $region9: #{tpu_custom_call.1} parent=1 // pred_fallthru
      _
    // Predicated region
    $region10: #{tpu_custom_call.1} parent=1 // pred_check
      _
    $region11: #{tpu_custom_call.1} parent=1 // pred_check_branch
      %14 = sbr.rel (0) target = $region13
    $region12: #{tpu_custom_call.1} parent=1 // pred_region
      _
    $region13: #{tpu_custom_call.1} parent=1 // pred_fallthru
      _
    %v16 = vld [vmem:[%s0] sm:$0xff]
    %v17 = vld [vmem:[%s0 + $0x8] sm:$0xff]
    %v18 = vld [vmem:[%s0 + $0x10] sm:$0xff]
    %v19 = vld [vmem:[%s0 + $0x18] sm:$0xff]
    %v20 = vld [vmem:[%s0 + $0x20] sm:$0xff]
    %v21 = vld [vmem:[%s0 + $0x28] sm:$0xff]
    %v22 = vld [vmem:[%s0 + $0x30] sm:$0xff]
    %v23 = vld [vmem:[%s0 + $0x38] sm:$0xff]
    %v24 = vld [vmem:[%s0 + $0x40] sm:$0xff]
    %v25 = vld [vmem:[%s0 + $0x48] sm:$0xff]
    %v26 = vld [vmem:[%s0 + $0x50] sm:$0xff]
    %v27 = vld [vmem:[%s0 + $0x58] sm:$0xff]
    %v28 = vld [vmem:[%s0 + $0x60] sm:$0xff]
    %v29 = vld [vmem:[%s0 + $0x68] sm:$0xff]
    %v30 = vld [vmem:[%s0 + $0x70] sm:$0xff]
    %v31 = vld [vmem:[%s0 + $0x78] sm:$0xff]
    %v32 = vld [vmem:[%s0 + $0x80] sm:$0xff]
    %v33 = vld [vmem:[%s0 + $0x88] sm:$0xff]
    %v34 = vld [vmem:[%s0 + $0x90] sm:$0xff]
    %v35 = vld [vmem:[%s0 + $0x98] sm:$0xff]
    %v36 = vld [vmem:[%s0 + $0xa0] sm:$0xff]
    %v37 = vld [vmem:[%s0 + $0xa8] sm:$0xff]
    %v38 = vld [vmem:[%s0 + $0xb0] sm:$0xff]
    %v39 = vld [vmem:[%s0 + $0xb8] sm:$0xff]
    %v56 = vunpack.c.l.b16 %v16
    %v57 = vunpack.c.h.b16 %v16
    %v58 = vunpack.c.l.b16 %v17
    %v59 = vunpack.c.h.b16 %v17
    %v60 = vunpack.c.l.b16 %v19
    %v61 = vunpack.c.h.b16 %v19
    %v62 = vunpack.c.l.b16 %v20
    %v63 = vunpack.c.h.b16 %v20
    %v64 = vunpack.c.l.b16 %v22
    %v65 = vunpack.c.h.b16 %v22
    %v66 = vunpack.c.l.b16 %v23
    %v67 = vunpack.c.h.b16 %v23
    %v68 = vunpack.c.l.b16 %v25
    %v69 = vunpack.c.h.b16 %v25
    %v70 = vunpack.c.l.b16 %v26
    %v71 = vunpack.c.h.b16 %v26
    %v72 = vunpack.c.l.b16 %v28
    %v73 = vunpack.c.h.b16 %v28
    %v74 = vunpack.c.l.b16 %v29
    %v75 = vunpack.c.h.b16 %v29
    %v76 = vunpack.c.l.b16 %v31
    %v77 = vunpack.c.h.b16 %v31
    %v78 = vunpack.c.l.b16 %v32
    %v79 = vunpack.c.h.b16 %v32
    %v80 = vunpack.c.l.b16 %v34
    %v81 = vunpack.c.h.b16 %v34
    %v82 = vunpack.c.l.b16 %v35
    %v83 = vunpack.c.h.b16 %v35
    %v84 = vunpack.c.l.b16 %v37
    %v85 = vunpack.c.h.b16 %v37
    %v86 = vunpack.c.l.b16 %v38
    %v87 = vunpack.c.h.b16 %v38
    %v88 = vpack.c.b16 %v58, %v56
    %v89 = vpack.c.b16 %v59, %v57
    %v90 = vpack.c.b16 %v62, %v60
    %v91 = vpack.c.b16 %v63, %v61
    %v92 = vpack.c.b16 %v66, %v64
    %v93 = vpack.c.b16 %v67, %v65
    %v94 = vpack.c.b16 %v70, %v68
    %v95 = vpack.c.b16 %v71, %v69
    %v96 = vpack.c.b16 %v74, %v72
    %v97 = vpack.c.b16 %v75, %v73
    %v98 = vpack.c.b16 %v78, %v76
    %v99 = vpack.c.b16 %v79, %v77
    %v100 = vpack.c.b16 %v82, %v80
    %v101 = vpack.c.b16 %v83, %v81
    %v102 = vpack.c.b16 %v86, %v84
    %v103 = vpack.c.b16 %v87, %v85
    %v128 = vunpack.c.l.b16 %v18
    %v129 = vunpack.c.h.b16 %v18
    %v130 = vunpack.c.l.b16 %v21
    %v131 = vunpack.c.h.b16 %v21
    %v132 = vunpack.c.l.b16 %v24
    %v133 = vunpack.c.h.b16 %v24
    %v134 = vunpack.c.l.b16 %v27
    %v135 = vunpack.c.h.b16 %v27
    %v136 = vunpack.c.l.b16 %v30
    %v137 = vunpack.c.h.b16 %v30
    %v138 = vunpack.c.l.b16 %v33
    %v139 = vunpack.c.h.b16 %v33
    %v140 = vunpack.c.l.b16 %v36
    %v141 = vunpack.c.h.b16 %v36
    %v142 = vunpack.c.l.b16 %v39
    %v143 = vunpack.c.h.b16 %v39
    %v144 = vpack.c.b16 %v128, %v128
    %v145 = vpack.c.b16 %v129, %v129
    %v146 = vpack.c.b16 %v130, %v130
    %v147 = vpack.c.b16 %v131, %v131
    %v148 = vpack.c.b16 %v132, %v132
    %v149 = vpack.c.b16 %v133, %v133
    %v150 = vpack.c.b16 %v134, %v134
    %v151 = vpack.c.b16 %v135, %v135
    %v152 = vpack.c.b16 %v136, %v136
    %v153 = vpack.c.b16 %v137, %v137
    %v154 = vpack.c.b16 %v138, %v138
    %v155 = vpack.c.b16 %v139, %v139
    %v156 = vpack.c.b16 %v140, %v140
    %v157 = vpack.c.b16 %v141, %v141
    %v158 = vpack.c.b16 %v142, %v142
    %v159 = vpack.c.b16 %v143, %v143
    %vm160 = vsmask.f32 7424
    %v162 = vshrl.u32 %v88, 16
    %v164 = vshll.u32 %v88, 16
    %v166 = vrot.slane %v164, 1
    %v167 = vor.u32 %v162, %v166
    %v169 = vshll.u32 %v144, 16
    %v171 = vrot.slane %v169, 1
    %v172 = vsel %vm160, %v167, %v171
    %v174 = vshrl.u32 %v89, 16
    %v176 = vshll.u32 %v89, 16
    %v178 = vrot.slane %v176, 1
    %v179 = vor.u32 %v174, %v178
    %v181 = vshll.u32 %v145, 16
    %v183 = vrot.slane %v181, 1
    %v184 = vsel %vm160, %v179, %v183
    %v186 = vshrl.u32 %v90, 16
    %v188 = vshll.u32 %v90, 16
    %v190 = vrot.slane %v188, 1
    %v191 = vor.u32 %v186, %v190
    %v193 = vshll.u32 %v146, 16
    %v195 = vrot.slane %v193, 1
    %v196 = vsel %vm160, %v191, %v195
    %v198 = vshrl.u32 %v91, 16
    %v200 = vshll.u32 %v91, 16
    %v202 = vrot.slane %v200, 1
    %v203 = vor.u32 %v198, %v202
    %v205 = vshll.u32 %v147, 16
    %v207 = vrot.slane %v205, 1
    %v208 = vsel %vm160, %v203, %v207
    %v210 = vshrl.u32 %v92, 16
    %v212 = vshll.u32 %v92, 16
    %v214 = vrot.slane %v212, 1
    %v215 = vor.u32 %v210, %v214
    %v217 = vshll.u32 %v148, 16
    %v219 = vrot.slane %v217, 1
    %v220 = vsel %vm160, %v215, %v219
    %v222 = vshrl.u32 %v93, 16
    %v224 = vshll.u32 %v93, 16
    %v226 = vrot.slane %v224, 1
    %v227 = vor.u32 %v222, %v226
    %v229 = vshll.u32 %v149, 16
    %v231 = vrot.slane %v229, 1
    %v232 = vsel %vm160, %v227, %v231
    %v234 = vshrl.u32 %v94, 16
    %v236 = vshll.u32 %v94, 16
    %v238 = vrot.slane %v236, 1
    %v239 = vor.u32 %v234, %v238
    %v241 = vshll.u32 %v150, 16
    %v243 = vrot.slane %v241, 1
    %v244 = vsel %vm160, %v239, %v243
    %v246 = vshrl.u32 %v95, 16
    %v248 = vshll.u32 %v95, 16
    %v250 = vrot.slane %v248, 1
    %v251 = vor.u32 %v246, %v250
    %v253 = vshll.u32 %v151, 16
    %v255 = vrot.slane %v253, 1
    %v256 = vsel %vm160, %v251, %v255
    %v258 = vshrl.u32 %v96, 16
    %v260 = vshll.u32 %v96, 16
    %v262 = vrot.slane %v260, 1
    %v263 = vor.u32 %v258, %v262
    %v265 = vshll.u32 %v152, 16
    %v267 = vrot.slane %v265, 1
    %v268 = vsel %vm160, %v263, %v267
    %v270 = vshrl.u32 %v97, 16
    %v272 = vshll.u32 %v97, 16
    %v274 = vrot.slane %v272, 1
    %v275 = vor.u32 %v270, %v274
    %v277 = vshll.u32 %v153, 16
    %v279 = vrot.slane %v277, 1
    %v280 = vsel %vm160, %v275, %v279
    %v282 = vshrl.u32 %v98, 16
    %v284 = vshll.u32 %v98, 16
    %v286 = vrot.slane %v284, 1
    %v287 = vor.u32 %v282, %v286
    %v289 = vshll.u32 %v154, 16
    %v291 = vrot.slane %v289, 1
    %v292 = vsel %vm160, %v287, %v291
    %v294 = vshrl.u32 %v99, 16
    %v296 = vshll.u32 %v99, 16
    %v298 = vrot.slane %v296, 1
    %v299 = vor.u32 %v294, %v298
    %v301 = vshll.u32 %v155, 16
    %v303 = vrot.slane %v301, 1
    %v304 = vsel %vm160, %v299, %v303
    %v306 = vshrl.u32 %v100, 16
    %v308 = vshll.u32 %v100, 16
    %v310 = vrot.slane %v308, 1
    %v311 = vor.u32 %v306, %v310
    %v313 = vshll.u32 %v156, 16
    %v315 = vrot.slane %v313, 1
    %v316 = vsel %vm160, %v311, %v315
    %v318 = vshrl.u32 %v101, 16
    %v320 = vshll.u32 %v101, 16
    %v322 = vrot.slane %v320, 1
    %v323 = vor.u32 %v318, %v322
    %v325 = vshll.u32 %v157, 16
    %v327 = vrot.slane %v325, 1
    %v328 = vsel %vm160, %v323, %v327
    %v330 = vshrl.u32 %v102, 16
    %v332 = vshll.u32 %v102, 16
    %v334 = vrot.slane %v332, 1
    %v335 = vor.u32 %v330, %v334
    %v337 = vshll.u32 %v158, 16
    %v339 = vrot.slane %v337, 1
    %v340 = vsel %vm160, %v335, %v339
    %v342 = vshrl.u32 %v103, 16
    %v344 = vshll.u32 %v103, 16
    %v346 = vrot.slane %v344, 1
    %v347 = vor.u32 %v342, %v346
    %v349 = vshll.u32 %v159, 16
    %v351 = vrot.slane %v349, 1
    %v352 = vsel %vm160, %v347, %v351
    %vm369 = vcmask 1046528
    %v370 = vrot.slane %v88, 1
    %v371 = vrot.slane %v144, 1
    %v372 = vsel %vm369, %v370, %v371
    %v373 = vrot.slane %v89, 1
    %v374 = vrot.slane %v145, 1
    %v375 = vsel %vm369, %v373, %v374
    %v376 = vrot.slane %v90, 1
    %v377 = vrot.slane %v146, 1
    %v378 = vsel %vm369, %v376, %v377
    %v379 = vrot.slane %v91, 1
    %v380 = vrot.slane %v147, 1
    %v381 = vsel %vm369, %v379, %v380
    %v382 = vrot.slane %v92, 1
    %v383 = vrot.slane %v148, 1
    %v384 = vsel %vm369, %v382, %v383
    %v385 = vrot.slane %v93, 1
    %v386 = vrot.slane %v149, 1
    %v387 = vsel %vm369, %v385, %v386
    %v388 = vrot.slane %v94, 1
    %v389 = vrot.slane %v150, 1
    %v390 = vsel %vm369, %v388, %v389
    %v391 = vrot.slane %v95, 1
    %v392 = vrot.slane %v151, 1
    %v393 = vsel %vm369, %v391, %v392
    %v394 = vrot.slane %v96, 1
    %v395 = vrot.slane %v152, 1
    %v396 = vsel %vm369, %v394, %v395
    %v397 = vrot.slane %v97, 1
    %v398 = vrot.slane %v153, 1
    %v399 = vsel %vm369, %v397, %v398
    %v400 = vrot.slane %v98, 1
    %v401 = vrot.slane %v154, 1
    %v402 = vsel %vm369, %v400, %v401
    %v403 = vrot.slane %v99, 1
    %v404 = vrot.slane %v155, 1
    %v405 = vsel %vm369, %v403, %v404
    %v406 = vrot.slane %v100, 1
    %v407 = vrot.slane %v156, 1
    %v408 = vsel %vm369, %v406, %v407
    %v409 = vrot.slane %v101, 1
    %v410 = vrot.slane %v157, 1
    %v411 = vsel %vm369, %v409, %v410
    %v412 = vrot.slane %v102, 1
    %v413 = vrot.slane %v158, 1
    %v414 = vsel %vm369, %v412, %v413
    %v415 = vrot.slane %v103, 1
    %v416 = vrot.slane %v159, 1
    %v417 = vsel %vm369, %v415, %v416
    %v434 = vld [vmem:[%s1] sm:$0xf]
    %v435 = vld [vmem:[%s1 + $0x4] sm:$0xf]
    %v436 = vld [vmem:[%s1 + $0x8] sm:$0xf]
    %v437 = vld [vmem:[%s1 + $0xc] sm:$0xf]
    %v438 = vld [vmem:[%s1 + $0x10] sm:$0xf]
    %v439 = vld [vmem:[%s1 + $0x14] sm:$0xf]
    %v440 = vld [vmem:[%s1 + $0x18] sm:$0xf]
    %v441 = vld [vmem:[%s1 + $0x1c] sm:$0xf]
    %v442 = vld [vmem:[%s1 + $0x20] sm:$0xf]
    %v443 = vld [vmem:[%s1 + $0x24] sm:$0xf]
    %v444 = vld [vmem:[%s1 + $0x28] sm:$0xf]
    %v445 = vld [vmem:[%s1 + $0x2c] sm:$0xf]
    %v446 = vld [vmem:[%s1 + $0x30] sm:$0xf]
    %v447 = vld [vmem:[%s1 + $0x34] sm:$0xf]
    %v448 = vld [vmem:[%s1 + $0x38] sm:$0xf]
    %v449 = vld [vmem:[%s1 + $0x3c] sm:$0xf]
    %v450 = vld [vmem:[%s1 + $0x40] sm:$0xf]
    %v451 = vld [vmem:[%s1 + $0x44] sm:$0xf]
    %v452 = vld [vmem:[%s1 + $0x48] sm:$0xf]
    %v453 = vld [vmem:[%s1 + $0x4c] sm:$0xf]
    %v454 = vld [vmem:[%s1 + $0x50] sm:$0xf]
    %v455 = vld [vmem:[%s1 + $0x54] sm:$0xf]
    %v456 = vld [vmem:[%s1 + $0x58] sm:$0xf]
    %v457 = vld [vmem:[%s1 + $0x5c] sm:$0xf]
    %v458 = vld [vmem:[%s1 + $0x60] sm:$0xf]
    %v459 = vld [vmem:[%s1 + $0x64] sm:$0xf]
    %v460 = vld [vmem:[%s1 + $0x68] sm:$0xf]
    %v461 = vld [vmem:[%s1 + $0x6c] sm:$0xf]
    %v462 = vld [vmem:[%s1 + $0x70] sm:$0xf]
    %v463 = vld [vmem:[%s1 + $0x74] sm:$0xf]
    %v464 = vld [vmem:[%s1 + $0x78] sm:$0xf]
    %v465 = vld [vmem:[%s1 + $0x7c] sm:$0xf]
    %v466 = vld [vmem:[%s1 + $0x80] sm:$0xf]
    %v467 = vld [vmem:[%s1 + $0x84] sm:$0xf]
    %v468 = vld [vmem:[%s1 + $0x88] sm:$0xf]
    %v469 = vld [vmem:[%s1 + $0x8c] sm:$0xf]
    %v470 = vld [vmem:[%s1 + $0x90] sm:$0xf]
    %v471 = vld [vmem:[%s1 + $0x94] sm:$0xf]
    %v472 = vld [vmem:[%s1 + $0x98] sm:$0xf]
    %v473 = vld [vmem:[%s1 + $0x9c] sm:$0xf]
    %v474 = vld [vmem:[%s1 + $0xa0] sm:$0xf]
    %v475 = vld [vmem:[%s1 + $0xa4] sm:$0xf]
    %v476 = vld [vmem:[%s1 + $0xa8] sm:$0xf]
    %v477 = vld [vmem:[%s1 + $0xac] sm:$0xf]
    %v478 = vld [vmem:[%s1 + $0xb0] sm:$0xf]
    %v479 = vld [vmem:[%s1 + $0xb4] sm:$0xf]
    %v480 = vld [vmem:[%s1 + $0xb8] sm:$0xf]
    %v481 = vld [vmem:[%s1 + $0xbc] sm:$0xf]
    %v482 = vld [vmem:[%s1 + $0xc0] sm:$0xf]
    %v483 = vld [vmem:[%s1 + $0xc4] sm:$0xf]
    %v484 = vld [vmem:[%s1 + $0xc8] sm:$0xf]
    %v485 = vld [vmem:[%s1 + $0xcc] sm:$0xf]
    %v486 = vld [vmem:[%s1 + $0xd0] sm:$0xf]
    %v487 = vld [vmem:[%s1 + $0xd4] sm:$0xf]
    %v488 = vld [vmem:[%s1 + $0xd8] sm:$0xf]
    %v489 = vld [vmem:[%s1 + $0xdc] sm:$0xf]
    %v490 = vld [vmem:[%s1 + $0xe0] sm:$0xf]
    %v491 = vld [vmem:[%s1 + $0xe4] sm:$0xf]
    %v492 = vld [vmem:[%s1 + $0xe8] sm:$0xf]
    %v493 = vld [vmem:[%s1 + $0xec] sm:$0xf]
    %v494 = vld [vmem:[%s1 + $0xf0] sm:$0xf]
    %v495 = vld [vmem:[%s1 + $0xf4] sm:$0xf]
    %v496 = vld [vmem:[%s1 + $0xf8] sm:$0xf]
    %v497 = vld [vmem:[%s1 + $0xfc] sm:$0xf]
    %v498 = vld [vmem:[%s1 + $0x100] sm:$0xf]
    %v499 = vld [vmem:[%s1 + $0x104] sm:$0xf]
    %v500 = vld [vmem:[%s1 + $0x108] sm:$0xf]
    %v501 = vld [vmem:[%s1 + $0x10c] sm:$0xf]
    %v502 = vld [vmem:[%s1 + $0x110] sm:$0xf]
    %v503 = vld [vmem:[%s1 + $0x114] sm:$0xf]
    %v504 = vld [vmem:[%s1 + $0x118] sm:$0xf]
    %v505 = vld [vmem:[%s1 + $0x11c] sm:$0xf]
    %v506 = vld [vmem:[%s1 + $0x120] sm:$0xf]
    %v507 = vld [vmem:[%s1 + $0x124] sm:$0xf]
    %v508 = vld [vmem:[%s1 + $0x128] sm:$0xf]
    %v509 = vld [vmem:[%s1 + $0x12c] sm:$0xf]
    %v510 = vld [vmem:[%s1 + $0x130] sm:$0xf]
    %v511 = vld [vmem:[%s1 + $0x134] sm:$0xf]
    %v512 = vld [vmem:[%s1 + $0x138] sm:$0xf]
    %v513 = vld [vmem:[%s1 + $0x13c] sm:$0xf]
    %v514 = vld [vmem:[%s1 + $0x140] sm:$0xf]
    %v515 = vld [vmem:[%s1 + $0x144] sm:$0xf]
    %v516 = vld [vmem:[%s1 + $0x148] sm:$0xf]
    %v517 = vld [vmem:[%s1 + $0x14c] sm:$0xf]
    %v518 = vld [vmem:[%s1 + $0x150] sm:$0xf]
    %v519 = vld [vmem:[%s1 + $0x154] sm:$0xf]
    %v520 = vld [vmem:[%s1 + $0x158] sm:$0xf]
    %v521 = vld [vmem:[%s1 + $0x15c] sm:$0xf]
    %v522 = vld [vmem:[%s1 + $0x160] sm:$0xf]
    %v523 = vld [vmem:[%s1 + $0x164] sm:$0xf]
    %v524 = vld [vmem:[%s1 + $0x168] sm:$0xf]
    %v525 = vld [vmem:[%s1 + $0x16c] sm:$0xf]
    %v526 = vld [vmem:[%s1 + $0x170] sm:$0xf]
    %v527 = vld [vmem:[%s1 + $0x174] sm:$0xf]
    %v528 = vld [vmem:[%s1 + $0x178] sm:$0xf]
    %v529 = vld [vmem:[%s1 + $0x17c] sm:$0xf]
    %v530 = vld [vmem:[%s2] sm:$0x1]
    %v532 = vlaneseq
    %v533 = vshrl.u32 %v532, 7
    %v534 = vsub.s32 0, %v533
    %v535 = vrot.slane %v530, %v534
    %v633 = vunpack.c.l.b16 %v434
    %v634 = vunpack.c.l.b16 %v435
    %v635 = vunpack.c.l.b16 %v436
    %v636 = vunpack.c.l.b16 %v437
    %v637 = vunpack.c.l.b16 %v438
    %v638 = vunpack.c.l.b16 %v439
    %v639 = vunpack.c.l.b16 %v440
    %v640 = vunpack.c.l.b16 %v441
    %v641 = vunpack.c.l.b16 %v442
    %v642 = vunpack.c.l.b16 %v443
    %v643 = vunpack.c.l.b16 %v444
    %v644 = vunpack.c.l.b16 %v445
    %v645 = vunpack.c.l.b16 %v446
    %v646 = vunpack.c.l.b16 %v447
    %v647 = vunpack.c.l.b16 %v448
    %v648 = vunpack.c.l.b16 %v449
    %v649 = vunpack.c.l.b16 %v450
    %v650 = vunpack.c.l.b16 %v451
    %v651 = vunpack.c.l.b16 %v452
    %v652 = vunpack.c.l.b16 %v453
    %v653 = vunpack.c.l.b16 %v454
    %v654 = vunpack.c.l.b16 %v455
    %v655 = vunpack.c.l.b16 %v456
    %v656 = vunpack.c.l.b16 %v457
    %v657 = vunpack.c.l.b16 %v458
    %v658 = vunpack.c.l.b16 %v459
    %v659 = vunpack.c.l.b16 %v460
    %v660 = vunpack.c.l.b16 %v461
    %v661 = vunpack.c.l.b16 %v462
    %v662 = vunpack.c.l.b16 %v463
    %v663 = vunpack.c.l.b16 %v464
    %v664 = vunpack.c.l.b16 %v465
    %v665 = vunpack.c.l.b16 %v466
    %v666 = vunpack.c.l.b16 %v467
    %v667 = vunpack.c.l.b16 %v468
    %v668 = vunpack.c.l.b16 %v469
    %v669 = vunpack.c.l.b16 %v470
    %v670 = vunpack.c.l.b16 %v471
    %v671 = vunpack.c.l.b16 %v472
    %v672 = vunpack.c.l.b16 %v473
    %v673 = vunpack.c.l.b16 %v474
    %v674 = vunpack.c.l.b16 %v475
    %v675 = vunpack.c.l.b16 %v476
    %v676 = vunpack.c.l.b16 %v477
    %v677 = vunpack.c.l.b16 %v478
    %v678 = vunpack.c.l.b16 %v479
    %v679 = vunpack.c.l.b16 %v480
    %v680 = vunpack.c.l.b16 %v481
    %v681 = vunpack.c.l.b16 %v482
    %v682 = vunpack.c.l.b16 %v483
    %v683 = vunpack.c.l.b16 %v484
    %v684 = vunpack.c.l.b16 %v485
    %v685 = vunpack.c.l.b16 %v486
    %v686 = vunpack.c.l.b16 %v487
    %v687 = vunpack.c.l.b16 %v488
    %v688 = vunpack.c.l.b16 %v489
    %v689 = vunpack.c.l.b16 %v490
    %v690 = vunpack.c.l.b16 %v491
    %v691 = vunpack.c.l.b16 %v492
    %v692 = vunpack.c.l.b16 %v493
    %v693 = vunpack.c.l.b16 %v494
    %v694 = vunpack.c.l.b16 %v495
    %v695 = vunpack.c.l.b16 %v496
    %v696 = vunpack.c.l.b16 %v497
    %v697 = vunpack.c.l.b16 %v498
    %v698 = vunpack.c.l.b16 %v499
    %v699 = vunpack.c.l.b16 %v500
    %v700 = vunpack.c.l.b16 %v501
    %v701 = vunpack.c.l.b16 %v502
    %v702 = vunpack.c.l.b16 %v503
    %v703 = vunpack.c.l.b16 %v504
    %v704 = vunpack.c.l.b16 %v505
    %v705 = vunpack.c.l.b16 %v506
    %v706 = vunpack.c.l.b16 %v507
    %v707 = vunpack.c.l.b16 %v508
    %v708 = vunpack.c.l.b16 %v509
    %v709 = vunpack.c.l.b16 %v510
    %v710 = vunpack.c.l.b16 %v511
    %v711 = vunpack.c.l.b16 %v512
    %v712 = vunpack.c.l.b16 %v513
    %v713 = vunpack.c.l.b16 %v514
    %v714 = vunpack.c.l.b16 %v515
    %v715 = vunpack.c.l.b16 %v516
    %v716 = vunpack.c.l.b16 %v517
    %v717 = vunpack.c.l.b16 %v518
    %v718 = vunpack.c.l.b16 %v519
    %v719 = vunpack.c.l.b16 %v520
    %v720 = vunpack.c.l.b16 %v521
    %v721 = vunpack.c.l.b16 %v522
    %v722 = vunpack.c.l.b16 %v523
    %v723 = vunpack.c.l.b16 %v524
    %v724 = vunpack.c.l.b16 %v525
    %v725 = vunpack.c.l.b16 %v526
    %v726 = vunpack.c.l.b16 %v527
    %v727 = vunpack.c.l.b16 %v528
    %v728 = vunpack.c.l.b16 %v529
    %v729 = vpack.c.b16 %v634, %v633
    %v730 = vpack.c.b16 %v636, %v635
    %v731 = vpack.c.b16 %v638, %v637
    %v732 = vpack.c.b16 %v640, %v639
    %v733 = vpack.c.b16 %v642, %v641
    %v734 = vpack.c.b16 %v644, %v643
    %v735 = vpack.c.b16 %v646, %v645
    %v736 = vpack.c.b16 %v648, %v647
    %v737 = vpack.c.b16 %v650, %v649
    %v738 = vpack.c.b16 %v652, %v651
    %v739 = vpack.c.b16 %v654, %v653
    %v740 = vpack.c.b16 %v656, %v655
    %v741 = vpack.c.b16 %v658, %v657
    %v742 = vpack.c.b16 %v660, %v659
    %v743 = vpack.c.b16 %v662, %v661
    %v744 = vpack.c.b16 %v664, %v663
    %v745 = vpack.c.b16 %v666, %v665
    %v746 = vpack.c.b16 %v668, %v667
    %v747 = vpack.c.b16 %v670, %v669
    %v748 = vpack.c.b16 %v672, %v671
    %v749 = vpack.c.b16 %v674, %v673
    %v750 = vpack.c.b16 %v676, %v675
    %v751 = vpack.c.b16 %v678, %v677
    %v752 = vpack.c.b16 %v680, %v679
    %v753 = vpack.c.b16 %v682, %v681
    %v754 = vpack.c.b16 %v684, %v683
    %v755 = vpack.c.b16 %v686, %v685
    %v756 = vpack.c.b16 %v688, %v687
    %v757 = vpack.c.b16 %v690, %v689
    %v758 = vpack.c.b16 %v692, %v691
    %v759 = vpack.c.b16 %v694, %v693
    %v760 = vpack.c.b16 %v696, %v695
    %v761 = vpack.c.b16 %v698, %v697
    %v762 = vpack.c.b16 %v700, %v699
    %v763 = vpack.c.b16 %v702, %v701
    %v764 = vpack.c.b16 %v704, %v703
    %v765 = vpack.c.b16 %v706, %v705
    %v766 = vpack.c.b16 %v708, %v707
    %v767 = vpack.c.b16 %v710, %v709
    %v768 = vpack.c.b16 %v712, %v711
    %v769 = vpack.c.b16 %v714, %v713
    %v770 = vpack.c.b16 %v716, %v715
    %v771 = vpack.c.b16 %v718, %v717
    %v772 = vpack.c.b16 %v720, %v719
    %v773 = vpack.c.b16 %v722, %v721
    %v774 = vpack.c.b16 %v724, %v723
    %v775 = vpack.c.b16 %v726, %v725
    %v776 = vpack.c.b16 %v728, %v727
    %825 = vmatprep.subr.bf16.mxu0 0
    %826 = vmatpush1.bf16.msra.mxu0 %v729
    %827 = vmatprep.subr.bf16.mxu0 0
    %828 = vmatpush1.bf16.msra.mxu0 %v730
    %829 = vmatprep.subr.bf16.mxu0 0
    %830 = vmatpush1.bf16.msra.mxu0 %v731
    %831 = vmatprep.subr.bf16.mxu0 0
    %832 = vmatpush1.bf16.msra.mxu0 %v732
    %833 = vmatprep.subr.bf16.mxu0 0
    %834 = vmatpush1.bf16.msra.mxu0 %v733
    %835 = vmatprep.subr.bf16.mxu0 0
    %836 = vmatpush1.bf16.msra.mxu0 %v734
    %837 = vmatprep.subr.bf16.mxu0 0
    %838 = vmatpush1.bf16.msra.mxu0 %v735
    %839 = vmatprep.subr.bf16.mxu0 0
    %840 = vmatpush1.bf16.msra.mxu0 %v736
    %841 = vmatprep.subr.bf16.mxu0 0
    %842 = vmatpush1.bf16.msra.mxu0 %v737
    %843 = vmatprep.subr.bf16.mxu0 0
    %844 = vmatpush1.bf16.msra.mxu0 %v738
    %845 = vmatprep.subr.bf16.mxu0 0
    %846 = vmatpush1.bf16.msra.mxu0 %v739
    %847 = vmatprep.subr.bf16.mxu0 0
    %848 = vmatpush1.bf16.msra.mxu0 %v740
    %849 = vmatprep.subr.bf16.mxu0 0
    %850 = vmatpush1.bf16.msra.mxu0 %v741
    %851 = vmatprep.subr.bf16.mxu0 0
    %852 = vmatpush1.bf16.msra.mxu0 %v742
    %853 = vmatprep.subr.bf16.mxu0 0
    %854 = vmatpush1.bf16.msra.mxu0 %v743
    %855 = vmatprep.subr.bf16.mxu0 0
    %856 = vmatpush1.bf16.msra.mxu0 %v744
    %857 = vmatprep.mubr.bf16.mxu0 %v89
    %858 = vmatmul.mubr.bf16.gmra.mrb[0].mxu0 %v88
    %v859 = vpop.f32.mrb[0].mxu0
    %v860 = vadd.f32 %v535, %v859
    %v861 = vpop.f32.mrb[0].mxu0
    %v862 = vpop.f32.mrb[0].mxu0
    %v863 = vadd.f32 %v535, %v862
    %v864 = vpop.f32.mrb[0].mxu0
    %865 = vmatprep.mubr.bf16.mxu0 %v91
    %866 = vmatmul.mubr.bf16.gmra.mrb[0].mxu0 %v90
    %v867 = vpop.f32.mrb[0].mxu0
    %v868 = vadd.f32 %v535, %v867
    %v869 = vpop.f32.mrb[0].mxu0
    %v870 = vpop.f32.mrb[0].mxu0
    %v871 = vadd.f32 %v535, %v870
    %v872 = vpop.f32.mrb[0].mxu0
    %873 = vmatprep.mubr.bf16.mxu0 %v93
    %874 = vmatmul.mubr.bf16.gmra.mrb[0].mxu0 %v92
    %v875 = vpop.f32.mrb[0].mxu0
    %v876 = vadd.f32 %v535, %v875
    %v877 = vpop.f32.mrb[0].mxu0
    %v878 = vpop.f32.mrb[0].mxu0
    %v879 = vadd.f32 %v535, %v878
    %v880 = vpop.f32.mrb[0].mxu0
    %881 = vmatprep.mubr.bf16.mxu0 %v95
    %882 = vmatmul.mubr.bf16.gmra.mrb[0].mxu0 %v94
    %v883 = vpop.f32.mrb[0].mxu0
    %v884 = vadd.f32 %v535, %v883
    %v885 = vpop.f32.mrb[0].mxu0
    %v886 = vpop.f32.mrb[0].mxu0
    %v887 = vadd.f32 %v535, %v886
    %v888 = vpop.f32.mrb[0].mxu0
    %889 = vmatprep.mubr.bf16.mxu0 %v97
    %890 = vmatmul.mubr.bf16.gmra.mrb[0].mxu0 %v96
    %v891 = vpop.f32.mrb[0].mxu0
    %v892 = vadd.f32 %v535, %v891
    %v893 = vpop.f32.mrb[0].mxu0
    %v894 = vpop.f32.mrb[0].mxu0
    %v895 = vadd.f32 %v535, %v894
    %v896 = vpop.f32.mrb[0].mxu0
    %897 = vmatprep.mubr.bf16.mxu0 %v99
    %898 = vmatmul.mubr.bf16.gmra.mrb[0].mxu0 %v98
    %v899 = vpop.f32.mrb[0].mxu0
    %v900 = vadd.f32 %v535, %v899
    %v901 = vpop.f32.mrb[0].mxu0
    %v902 = vpop.f32.mrb[0].mxu0
    %v903 = vadd.f32 %v535, %v902
    %v904 = vpop.f32.mrb[0].mxu0
    %905 = vmatprep.mubr.bf16.mxu0 %v101
    %906 = vmatmul.mubr.bf16.gmra.mrb[0].mxu0 %v100
    %v907 = vpop.f32.mrb[0].mxu0
    %v908 = vadd.f32 %v535, %v907
    %v909 = vpop.f32.mrb[0].mxu0
    %v910 = vpop.f32.mrb[0].mxu0
    %v911 = vadd.f32 %v535, %v910
    %v912 = vpop.f32.mrb[0].mxu0
    %913 = vmatprep.mubr.bf16.mxu0 %v103
    %914 = vmatmul.mubr.bf16.gmra.mrb[0].mxu0 %v102
    %v915 = vpop.f32.mrb[0].mxu0
    %v916 = vadd.f32 %v535, %v915
    %v917 = vpop.f32.mrb[0].mxu0
    %v918 = vpop.f32.mrb[0].mxu0
    %v919 = vadd.f32 %v535, %v918
    %v920 = vpop.f32.mrb[0].mxu0
    %921 = vdwg.mxu0
    %922 = vmatprep.subr.bf16.mxu0 0
    %923 = vmatpush1.bf16.msra.mxu0 %v745
    %924 = vmatprep.subr.bf16.mxu0 0
    %925 = vmatpush1.bf16.msra.mxu0 %v746
    %926 = vmatprep.subr.bf16.mxu0 0
    %927 = vmatpush1.bf16.msra.mxu0 %v747
    %928 = vmatprep.subr.bf16.mxu0 0
    %929 = vmatpush1.bf16.msra.mxu0 %v748
    %930 = vmatprep.subr.bf16.mxu0 0
    %931 = vmatpush1.bf16.msra.mxu0 %v749
    %932 = vmatprep.subr.bf16.mxu0 0
    %933 = vmatpush1.bf16.msra.mxu0 %v750
    %934 = vmatprep.subr.bf16.mxu0 0
    %935 = vmatpush1.bf16.msra.mxu0 %v751
    %936 = vmatprep.subr.bf16.mxu0 0
    %937 = vmatpush1.bf16.msra.mxu0 %v752
    %938 = vmatprep.subr.bf16.mxu0 0
    %939 = vmatpush1.bf16.msra.mxu0 %v753
    %940 = vmatprep.subr.bf16.mxu0 0
    %941 = vmatpush1.bf16.msra.mxu0 %v754
    %942 = vmatprep.subr.bf16.mxu0 0
    %943 = vmatpush1.bf16.msra.mxu0 %v755
    %944 = vmatprep.subr.bf16.mxu0 0
    %945 = vmatpush1.bf16.msra.mxu0 %v756
    %946 = vmatprep.subr.bf16.mxu0 0
    %947 = vmatpush1.bf16.msra.mxu0 %v757
    %948 = vmatprep.subr.bf16.mxu0 0
    %949 = vmatpush1.bf16.msra.mxu0 %v758
    %950 = vmatprep.subr.bf16.mxu0 0
    %951 = vmatpush1.bf16.msra.mxu0 %v759
    %952 = vmatprep.subr.bf16.mxu0 0
    %953 = vmatpush1.bf16.msra.mxu0 %v760
    %954 = vmatprep.mubr.bf16.mxu0 %v184
    %955 = vmatmul.mubr.bf16.gmra.mrb[0].mxu0 %v172
    %v956 = vpop.f32.mrb[0].mxu0
    %v957 = vadd.f32 %v860, %v956
    %v958 = vpop.f32.mrb[0].mxu0
    %v959 = vpop.f32.mrb[0].mxu0
    %v960 = vadd.f32 %v863, %v959
    %v961 = vpop.f32.mrb[0].mxu0
    %962 = vmatprep.mubr.bf16.mxu0 %v208
    %963 = vmatmul.mubr.bf16.gmra.mrb[0].mxu0 %v196
    %v964 = vpop.f32.mrb[0].mxu0
    %v965 = vadd.f32 %v868, %v964
    %v966 = vpop.f32.mrb[0].mxu0
    %v967 = vpop.f32.mrb[0].mxu0
    %v968 = vadd.f32 %v871, %v967
    %v969 = vpop.f32.mrb[0].mxu0
    %970 = vmatprep.mubr.bf16.mxu0 %v232
    %971 = vmatmul.mubr.bf16.gmra.mrb[0].mxu0 %v220
    %v972 = vpop.f32.mrb[0].mxu0
    %v973 = vadd.f32 %v876, %v972
    %v974 = vpop.f32.mrb[0].mxu0
    %v975 = vpop.f32.mrb[0].mxu0
    %v976 = vadd.f32 %v879, %v975
    %v977 = vpop.f32.mrb[0].mxu0
    %978 = vmatprep.mubr.bf16.mxu0 %v256
    %979 = vmatmul.mubr.bf16.gmra.mrb[0].mxu0 %v244
    %v980 = vpop.f32.mrb[0].mxu0
    %v981 = vadd.f32 %v884, %v980
    %v982 = vpop.f32.mrb[0].mxu0
    %v983 = vpop.f32.mrb[0].mxu0
    %v984 = vadd.f32 %v887, %v983
    %v985 = vpop.f32.mrb[0].mxu0
    %986 = vmatprep.mubr.bf16.mxu0 %v280
    %987 = vmatmul.mubr.bf16.gmra.mrb[0].mxu0 %v268
    %v988 = vpop.f32.mrb[0].mxu0
    %v989 = vadd.f32 %v892, %v988
    %v990 = vpop.f32.mrb[0].mxu0
    %v991 = vpop.f32.mrb[0].mxu0
    %v992 = vadd.f32 %v895, %v991
    %v993 = vpop.f32.mrb[0].mxu0
    %994 = vmatprep.mubr.bf16.mxu0 %v304
    %995 = vmatmul.mubr.bf16.gmra.mrb[0].mxu0 %v292
    %v996 = vpop.f32.mrb[0].mxu0
    %v997 = vadd.f32 %v900, %v996
    %v998 = vpop.f32.mrb[0].mxu0
    %v999 = vpop.f32.mrb[0].mxu0
    %v1000 = vadd.f32 %v903, %v999
    %v1001 = vpop.f32.mrb[0].mxu0
    %1002 = vmatprep.mubr.bf16.mxu0 %v328
    %1003 = vmatmul.mubr.bf16.gmra.mrb[0].mxu0 %v316
    %v1004 = vpop.f32.mrb[0].mxu0
    %v1005 = vadd.f32 %v908, %v1004
    %v1006 = vpop.f32.mrb[0].mxu0
    %v1007 = vpop.f32.mrb[0].mxu0
    %v1008 = vadd.f32 %v911, %v1007
    %v1009 = vpop.f32.mrb[0].mxu0
    %1010 = vmatprep.mubr.bf16.mxu0 %v352
    %1011 = vmatmul.mubr.bf16.gmra.mrb[0].mxu0 %v340
    %v1012 = vpop.f32.mrb[0].mxu0
    %v1013 = vadd.f32 %v916, %v1012
    %v1014 = vpop.f32.mrb[0].mxu0
    %v1015 = vpop.f32.mrb[0].mxu0
    %v1016 = vadd.f32 %v919, %v1015
    %v1017 = vpop.f32.mrb[0].mxu0
    %1018 = vdwg.mxu0
    %1019 = vmatprep.subr.bf16.mxu0 0
    %1020 = vmatpush1.bf16.msra.mxu0 %v761
    %1021 = vmatprep.subr.bf16.mxu0 0
    %1022 = vmatpush1.bf16.msra.mxu0 %v762
    %1023 = vmatprep.subr.bf16.mxu0 0
    %1024 = vmatpush1.bf16.msra.mxu0 %v763
    %1025 = vmatprep.subr.bf16.mxu0 0
    %1026 = vmatpush1.bf16.msra.mxu0 %v764
    %1027 = vmatprep.subr.bf16.mxu0 0
    %1028 = vmatpush1.bf16.msra.mxu0 %v765
    %1029 = vmatprep.subr.bf16.mxu0 0
    %1030 = vmatpush1.bf16.msra.mxu0 %v766
    %1031 = vmatprep.subr.bf16.mxu0 0
    %1032 = vmatpush1.bf16.msra.mxu0 %v767
    %1033 = vmatprep.subr.bf16.mxu0 0
    %1034 = vmatpush1.bf16.msra.mxu0 %v768
    %1035 = vmatprep.subr.bf16.mxu0 0
    %1036 = vmatpush1.bf16.msra.mxu0 %v769
    %1037 = vmatprep.subr.bf16.mxu0 0
    %1038 = vmatpush1.bf16.msra.mxu0 %v770
    %1039 = vmatprep.subr.bf16.mxu0 0
    %1040 = vmatpush1.bf16.msra.mxu0 %v771
    %1041 = vmatprep.subr.bf16.mxu0 0
    %1042 = vmatpush1.bf16.msra.mxu0 %v772
    %1043 = vmatprep.subr.bf16.mxu0 0
    %1044 = vmatpush1.bf16.msra.mxu0 %v773
    %1045 = vmatprep.subr.bf16.mxu0 0
    %1046 = vmatpush1.bf16.msra.mxu0 %v774
    %1047 = vmatprep.subr.bf16.mxu0 0
    %1048 = vmatpush1.bf16.msra.mxu0 %v775
    %1049 = vmatprep.subr.bf16.mxu0 0
    %1050 = vmatpush1.bf16.msra.mxu0 %v776
    %1051 = vmatprep.mubr.bf16.mxu0 %v375
    %1052 = vmatmul.mubr.bf16.gmra.mrb[0].mxu0 %v372
    %v1053 = vpop.f32.mrb[0].mxu0
    %v1054 = vadd.f32 %v957, %v1053
    %v1055 = vpop.f32.mrb[0].mxu0
    %v1056 = vpop.f32.mrb[0].mxu0
    %v1057 = vadd.f32 %v960, %v1056
    %v1058 = vpop.f32.mrb[0].mxu0
    %1059 = vmatprep.mubr.bf16.mxu0 %v381
    %1060 = vmatmul.mubr.bf16.gmra.mrb[0].mxu0 %v378
    %v1061 = vpop.f32.mrb[0].mxu0
    %v1062 = vadd.f32 %v965, %v1061
    %v1063 = vpop.f32.mrb[0].mxu0
    %v1064 = vpop.f32.mrb[0].mxu0
    %v1065 = vadd.f32 %v968, %v1064
    %v1066 = vpop.f32.mrb[0].mxu0
    %1067 = vmatprep.mubr.bf16.mxu0 %v387
    %1068 = vmatmul.mubr.bf16.gmra.mrb[0].mxu0 %v384
    %v1069 = vpop.f32.mrb[0].mxu0
    %v1070 = vadd.f32 %v973, %v1069
    %v1071 = vpop.f32.mrb[0].mxu0
    %v1072 = vpop.f32.mrb[0].mxu0
    %v1073 = vadd.f32 %v976, %v1072
    %v1074 = vpop.f32.mrb[0].mxu0
    %1075 = vmatprep.mubr.bf16.mxu0 %v393
    %1076 = vmatmul.mubr.bf16.gmra.mrb[0].mxu0 %v390
    %v1077 = vpop.f32.mrb[0].mxu0
    %v1078 = vadd.f32 %v981, %v1077
    %v1079 = vpop.f32.mrb[0].mxu0
    %v1080 = vpop.f32.mrb[0].mxu0
    %v1081 = vadd.f32 %v984, %v1080
    %v1082 = vpop.f32.mrb[0].mxu0
    %1083 = vmatprep.mubr.bf16.mxu0 %v399
    %1084 = vmatmul.mubr.bf16.gmra.mrb[0].mxu0 %v396
    %v1085 = vpop.f32.mrb[0].mxu0
    %v1086 = vadd.f32 %v989, %v1085
    %v1087 = vpop.f32.mrb[0].mxu0
    %v1088 = vpop.f32.mrb[0].mxu0
    %v1089 = vadd.f32 %v992, %v1088
    %v1090 = vpop.f32.mrb[0].mxu0
    %1091 = vmatprep.mubr.bf16.mxu0 %v405
    %1092 = vmatmul.mubr.bf16.gmra.mrb[0].mxu0 %v402
    %v1093 = vpop.f32.mrb[0].mxu0
    %v1094 = vadd.f32 %v997, %v1093
    %v1095 = vpop.f32.mrb[0].mxu0
    %v1096 = vpop.f32.mrb[0].mxu0
    %v1097 = vadd.f32 %v1000, %v1096
    %v1098 = vpop.f32.mrb[0].mxu0
    %1099 = vmatprep.mubr.bf16.mxu0 %v411
    %1100 = vmatmul.mubr.bf16.gmra.mrb[0].mxu0 %v408
    %v1101 = vpop.f32.mrb[0].mxu0
    %v1102 = vadd.f32 %v1005, %v1101
    %v1103 = vpop.f32.mrb[0].mxu0
    %v1104 = vpop.f32.mrb[0].mxu0
    %v1105 = vadd.f32 %v1008, %v1104
    %v1106 = vpop.f32.mrb[0].mxu0
    %1107 = vmatprep.mubr.bf16.mxu0 %v417
    %1108 = vmatmul.mubr.bf16.gmra.mrb[0].mxu0 %v414
    %v1109 = vpop.f32.mrb[0].mxu0
    %v1110 = vadd.f32 %v1013, %v1109
    %v1111 = vpop.f32.mrb[0].mxu0
    %v1112 = vpop.f32.mrb[0].mxu0
    %v1113 = vadd.f32 %v1016, %v1112
    %v1114 = vpop.f32.mrb[0].mxu0
    %1115 = vdwg.mxu0
    %vm1116 = vcmask 261120
    %v1117 = vsel %vm1116, %v1054, -inf
    %v1118 = vsel %vm1116, %v1057, -inf
    %v1119 = vmax.f32 %v1117, %v1118
    %v1120 = vrot.slane %v1119, 4
    %v1121 = vmax.f32 %v1119, %v1120
    %v1122 = vrot.slane %v1121, 2
    %v1123 = vmax.f32 %v1121, %v1122
    %v1124 = vrot.slane %v1123, 1
    %v1125 = vmax.f32 %v1123, %v1124
    %v1126 = vsel %vm1116, %v1062, -inf
    %v1127 = vsel %vm1116, %v1065, -inf
    %v1128 = vmax.f32 %v1126, %v1127
    %v1129 = vrot.slane %v1128, 4
    %v1130 = vmax.f32 %v1128, %v1129
    %v1131 = vrot.slane %v1130, 2
    %v1132 = vmax.f32 %v1130, %v1131
    %v1133 = vrot.slane %v1132, 1
    %v1134 = vmax.f32 %v1132, %v1133
    %v1135 = vsel %vm1116, %v1070, -inf
    %v1136 = vsel %vm1116, %v1073, -inf
    %v1137 = vmax.f32 %v1135, %v1136
    %v1138 = vrot.slane %v1137, 4
    %v1139 = vmax.f32 %v1137, %v1138
    %v1140 = vrot.slane %v1139, 2
    %v1141 = vmax.f32 %v1139, %v1140
    %v1142 = vrot.slane %v1141, 1
    %v1143 = vmax.f32 %v1141, %v1142
    %v1144 = vsel %vm1116, %v1078, -inf
    %v1145 = vsel %vm1116, %v1081, -inf
    %v1146 = vmax.f32 %v1144, %v1145
    %v1147 = vrot.slane %v1146, 4
    %v1148 = vmax.f32 %v1146, %v1147
    %v1149 = vrot.slane %v1148, 2
    %v1150 = vmax.f32 %v1148, %v1149
    %v1151 = vrot.slane %v1150, 1
    %v1152 = vmax.f32 %v1150, %v1151
    %v1153 = vsel %vm1116, %v1086, -inf
    %v1154 = vsel %vm1116, %v1089, -inf
    %v1155 = vmax.f32 %v1153, %v1154
    %v1156 = vrot.slane %v1155, 4
    %v1157 = vmax.f32 %v1155, %v1156
    %v1158 = vrot.slane %v1157, 2
    %v1159 = vmax.f32 %v1157, %v1158
    %v1160 = vrot.slane %v1159, 1
    %v1161 = vmax.f32 %v1159, %v1160
    %v1162 = vsel %vm1116, %v1094, -inf
    %v1163 = vsel %vm1116, %v1097, -inf
    %v1164 = vmax.f32 %v1162, %v1163
    %v1165 = vrot.slane %v1164, 4
    %v1166 = vmax.f32 %v1164, %v1165
    %v1167 = vrot.slane %v1166, 2
    %v1168 = vmax.f32 %v1166, %v1167
    %v1169 = vrot.slane %v1168, 1
    %v1170 = vmax.f32 %v1168, %v1169
    %v1171 = vsel %vm1116, %v1102, -inf
    %v1172 = vsel %vm1116, %v1105, -inf
    %v1173 = vmax.f32 %v1171, %v1172
    %v1174 = vrot.slane %v1173, 4
    %v1175 = vmax.f32 %v1173, %v1174
    %v1176 = vrot.slane %v1175, 2
    %v1177 = vmax.f32 %v1175, %v1176
    %v1178 = vrot.slane %v1177, 1
    %v1179 = vmax.f32 %v1177, %v1178
    %v1180 = vsel %vm1116, %v1110, -inf
    %v1181 = vsel %vm1116, %v1113, -inf
    %v1182 = vmax.f32 %v1180, %v1181
    %v1183 = vrot.slane %v1182, 4
    %v1184 = vmax.f32 %v1182, %v1183
    %v1185 = vrot.slane %v1184, 2
    %v1186 = vmax.f32 %v1184, %v1185
    %v1187 = vrot.slane %v1186, 1
    %v1188 = vmax.f32 %v1186, %v1187
    %v1189 = vmax.f32 %v1125, 0.0
    %v1190 = vmax.f32 %v1134, 0.0
    %v1191 = vmax.f32 %v1143, 0.0
    %v1192 = vmax.f32 %v1152, 0.0
    %v1193 = vmax.f32 %v1161, 0.0
    %v1194 = vmax.f32 %v1170, 0.0
    %v1195 = vmax.f32 %v1179, 0.0
    %v1196 = vmax.f32 %v1188, 0.0
    %vm1205 = vcmask 1041409
    %v1206 = vsel %vm1205, %v1190, %v1189
    %vm1207 = vcmask 1042434
    %v1208 = vsel %vm1207, %v1191, %v1206
    %vm1209 = vcmask 1043459
    %v1210 = vsel %vm1209, %v1192, %v1208
    %vm1211 = vcmask 1044484
    %v1212 = vsel %vm1211, %v1193, %v1210
    %vm1213 = vcmask 1045509
    %v1214 = vsel %vm1213, %v1194, %v1212
    %vm1215 = vcmask 1046534
    %v1216 = vsel %vm1215, %v1195, %v1214
    %vm1217 = vcmask 1047559
    %v1218 = vsel %vm1217, %v1196, %v1216
    %1220 = vst.msk [vmem:[#allocation2] sm:$0xff] %vm1116, %v1218
    // Predicated region
    $region14: #{tpu_custom_call.1} parent=1 // pred_check
      _
    $region15: #{tpu_custom_call.1} parent=1 // pred_check_branch
      %1222 = sbr.rel (0) target = $region17
    $region16: #{tpu_custom_call.1} parent=1 // pred_region
      %s1224 = ssub.s32 128, 128
      %1225 = vsyncadd [#allocation3], %s1224
      %s1227 = sshll.u32 [#allocation2], 4
      %s1228 = int_to_ptr.vmem [resolvable:$true] %s1227
      %1230 = dma.vmem_to_hbm [thread:$0]  %s1228, 128, %s3, [#allocation3]
    $region17: #{tpu_custom_call.1} parent=1 // pred_fallthru
      _
    // Predicated region
    $region18: #{tpu_custom_call.1} parent=1 // pred_check
      _
    $region19: #{tpu_custom_call.1} parent=1 // pred_check_branch
      %1232 = sbr.rel (0) target = $region21
    $region20: #{tpu_custom_call.1} parent=1 // pred_region
      %1233 = dma.done [#allocation3], 128
    $region21: #{tpu_custom_call.1} parent=1 // pred_fallthru
      _
    %1234 = vsyncpa [#allocation3], 1

</llo_original>
